<compile_context>
chip_gen: v6e
topology: v6e:2x2x1
jax: 0.10.0
libtpu: 0.0.40
codegen_flags: <defaults>
</compile_context>

<pallas_src>
import functools

import jax
import jax.numpy as jnp
from jax.experimental import pallas as pl
from jax.experimental.pallas import tpu as pltpu


def _round_up(x, m):
    return ((x + m - 1) // m) * m


def _ffn_ln_kernel(x_ref, w1_ref, b1_ref, w2_ref, b2_ref, a2_ref, bb2_ref,
                   o_ref, *, eps, apply_ln):
    # x block: (TM, d_hid) rows of the flattened (B*L, d_hid) input.
    # Keep MXU operands in native dtype; accumulate in f32.
    x = x_ref[...]

    # w_1: Conv1d(d_hid, d_inner, 1)  ==  x @ W1 + b1, then ReLU.
    h = jnp.dot(x, w1_ref[...], preferred_element_type=jnp.float32)
    h = jnp.maximum(h + b1_ref[...].astype(jnp.float32), 0.0)

    # w_2: Conv1d(d_inner, d_hid, 1)  ==  h @ W2 + b2.  Feed the MXU in the
    # input dtype (no-op for f32, bf16 path for bf16 inputs), accumulate f32.
    out = jnp.dot(h.astype(x_ref.dtype), w2_ref[...],
                  preferred_element_type=jnp.float32)
    out = out + b2_ref[...].astype(jnp.float32)

    # dropout(p=0.1) is identity at inference; residual add in f32.
    z = out + x.astype(jnp.float32)

    if apply_ln:
        # Custom LayerNormalization: unbiased std (ddof=1), eps added to sigma.
        d_hid = z.shape[-1]
        mu = jnp.mean(z, axis=-1, keepdims=True)
        diff = z - mu
        var = jnp.sum(diff * diff, axis=-1, keepdims=True) * (1.0 / (d_hid - 1))
        denom = jnp.sqrt(var) + eps                       # (TM, 1)
        # Per-row EUP approximate reciprocal + one Newton step (cheap, (TM,1)),
        # then a single broadcast multiply instead of d_hid divides per row.
        inv = pl.reciprocal(denom, approx=True)
        inv = inv * (2.0 - denom * inv)
        scale = inv * a2_ref[...].astype(jnp.float32)     # fold a_2 into the scale
        z = diff * scale + bb2_ref[...].astype(jnp.float32)

    o_ref[...] = z.astype(o_ref.dtype)


def positionwise_feed_forward(x, w1, b1, w2, b2, a2, b2_ln, *, eps=1e-3,
                              row_block=512):
    """Fused forward pass.  x: (B, L, d_hid); w1: (d_hid, d_inner); w2: (d_inner, d_hid)."""
    B, L, d_hid = x.shape
    d_inner = w1.shape[1]
    # LayerNormalization skips the norm when z.size(1) == 1; z is (B, L, d_hid).
    apply_ln = L != 1

    rows = B * L
    x2d = x.reshape(rows, d_hid)

    # Large, 8-aligned row tiles (MXU-friendly M), but never blow up tiny inputs.
    row_block = max(8, min(row_block, _round_up(rows, 8)))
    row_block = _round_up(row_block, 8)
    padded_rows = _round_up(rows, row_block)
    if padded_rows != rows:
        # Remainder tile: zero-pad.  LN statistics are per-row, so padded rows
        # never pollute real rows; they are sliced off below.
        x2d = jnp.pad(x2d, ((0, padded_rows - rows), (0, 0)))

    # 1-D params as (1, N) rows for TPU-friendly layouts.
    b1_2d = b1.reshape(1, d_inner)
    b2_2d = b2.reshape(1, d_hid)
    a2_2d = a2.reshape(1, d_hid)
    bb2_2d = b2_ln.reshape(1, d_hid)

    kernel = functools.partial(_ffn_ln_kernel, eps=eps, apply_ln=apply_ln)

    # NOTE(v7x): if d_hid*d_inner weights approach the 64 MiB VMEM budget, add a
    # K-tiling grid axis over d_inner with an f32 VMEM accumulator instead of
    # holding both full weight matrices resident.
    out2d = pl.pallas_call(
        kernel,
        out_shape=jax.ShapeDtypeStruct((padded_rows, d_hid), x.dtype),
        grid_spec=pltpu.PrefetchScalarGridSpec(
            num_scalar_prefetch=0,
            grid=(padded_rows // row_block,),
            in_specs=[
                pl.BlockSpec((row_block, d_hid), lambda i: (i, 0)),   # x rows (streamed)
                pl.BlockSpec((d_hid, d_inner), lambda i: (0, 0)),     # W1 (resident)
                pl.BlockSpec((1, d_inner), lambda i: (0, 0)),         # b1
                pl.BlockSpec((d_inner, d_hid), lambda i: (0, 0)),     # W2 (resident)
                pl.BlockSpec((1, d_hid), lambda i: (0, 0)),           # b2
                pl.BlockSpec((1, d_hid), lambda i: (0, 0)),           # LN scale a_2
                pl.BlockSpec((1, d_hid), lambda i: (0, 0)),           # LN bias b_2
            ],
            out_specs=pl.BlockSpec((row_block, d_hid), lambda i: (i, 0)),
        ),
        compiler_params=pltpu.CompilerParams(
            dimension_semantics=("parallel",),
            vmem_limit_bytes=64 << 20,
        ),
    )(x2d, w1, b1_2d, w2, b2_2d, a2_2d, bb2_2d)

    if padded_rows != rows:
        out2d = out2d[:rows]
    return out2d.reshape(B, L, d_hid)


def _reference(x, w1, b1, w2, b2, a2, b2_ln, eps=1e-3):
    h = jnp.maximum(x @ w1 + b1, 0.0)
    z = h @ w2 + b2 + x
    if x.shape[1] == 1:                       # LayerNormalization skip path
        return z
    d_hid = x.shape[-1]
    mu = jnp.mean(z, axis=-1, keepdims=True)
    sigma = jnp.sqrt(jnp.sum((z - mu) ** 2, axis=-1, keepdims=True) / (d_hid - 1))
    return (z - mu) / (sigma + eps) * a2 + b2_ln


if __name__ == "__main__":
    d_hid, d_inner = 32, 64
    key = jax.random.PRNGKey(0)
    kx, k1, kb1, k2, kb2 = jax.random.split(key, 5)

    # Conv1d(d_hid, d_inner, 1) weight is (d_inner, d_hid, 1) in torch; stored
    # here as (d_hid, d_inner) so the kernel computes x @ W1.
    w1 = 0.1 * jax.random.normal(k1, (d_hid, d_inner), dtype=jnp.float32)
    b1 = 0.1 * jax.random.normal(kb1, (d_inner,), dtype=jnp.float32)
    w2 = 0.1 * jax.random.normal(k2, (d_inner, d_hid), dtype=jnp.float32)
    b2 = 0.1 * jax.random.normal(kb2, (d_hid,), dtype=jnp.float32)
    a2 = jnp.ones((d_hid,), dtype=jnp.float32)      # LayerNormalization a_2
    b2_ln = jnp.zeros((d_hid,), dtype=jnp.float32)  # LayerNormalization b_2

    # (B, L): main case, a non-8-divisible case (exercises the padded remainder
    # tile), and the L == 1 LayerNorm-skip case.
    for B, L in ((2, 8), (3, 5), (2, 1)):
        x = jax.random.normal(kx, (B, L, d_hid), dtype=jnp.float32)
        out = positionwise_feed_forward(x, w1, b1, w2, b2, a2, b2_ln, eps=1e-3)
        jax.block_until_ready(out)
        ref = _reference(x, w1, b1, w2, b2, a2, b2_ln, eps=1e-3)
        assert out.shape == ref.shape
        assert jnp.allclose(out, ref, atol=1e-4, rtol=1e-4), (B, L)

    print("KERNEL_OK")
</pallas_src>

<mosaic_0001>
module attributes {stable_mosaic.version = 11 : i64} {
  func.func @_ffn_ln_kernel(%arg0: i32, %arg1: memref<16x32xf32, #tpu.memory_space<vmem>>, %arg2: memref<32x64xf32, #tpu.memory_space<vmem>>, %arg3: memref<1x64xf32, #tpu.memory_space<vmem>>, %arg4: memref<64x32xf32, #tpu.memory_space<vmem>>, %arg5: memref<1x32xf32, #tpu.memory_space<vmem>>, %arg6: memref<1x32xf32, #tpu.memory_space<vmem>>, %arg7: memref<1x32xf32, #tpu.memory_space<vmem>>, %arg8: memref<16x32xf32, #tpu.memory_space<vmem>>) attributes {dimension_semantics = [#tpu.dimension_semantics<parallel>], iteration_bounds = array<i64: 1>, scalar_prefetch = 0 : i64, scratch_operands = 0 : i64, tpu.core_type = #tpu.core_type<tc>, window_params = [{transform_indices = @transform_0, window_bounds = array<i64: 16, 32>}, {pipeline_mode = #tpu.pipeline_mode<synchronous>, transform_indices = @transform_1, window_bounds = array<i64: 32, 64>}, {pipeline_mode = #tpu.pipeline_mode<synchronous>, transform_indices = @transform_2, window_bounds = array<i64: 1, 64>}, {pipeline_mode = #tpu.pipeline_mode<synchronous>, transform_indices = @transform_3, window_bounds = array<i64: 64, 32>}, {pipeline_mode = #tpu.pipeline_mode<synchronous>, transform_indices = @transform_4, window_bounds = array<i64: 1, 32>}, {pipeline_mode = #tpu.pipeline_mode<synchronous>, transform_indices = @transform_5, window_bounds = array<i64: 1, 32>}, {pipeline_mode = #tpu.pipeline_mode<synchronous>, transform_indices = @transform_6, window_bounds = array<i64: 1, 32>}, {transform_indices = @transform_7, window_bounds = array<i64: 16, 32>}]} {
    %c0 = arith.constant 0 : index
    %c0_0 = arith.constant 0 : index
    %0 = vector.load %arg1[%c0, %c0_0] : memref<16x32xf32, #tpu.memory_space<vmem>>, vector<16x32xf32>
    %c0_1 = arith.constant 0 : index
    %c0_2 = arith.constant 0 : index
    %1 = vector.load %arg2[%c0_1, %c0_2] : memref<32x64xf32, #tpu.memory_space<vmem>>, vector<32x64xf32>
    %cst = arith.constant dense<0.000000e+00> : vector<16x64xf32>
    %2 = tpu.matmul %0, %1, %cst {dimension_numbers = #tpu.dot_dimension_numbers<[1], [0], [0], [1], [0, 0, 1, 1], [], []>} : vector<16x32xf32>, vector<32x64xf32>, vector<16x64xf32> -> vector<16x64xf32>
    %c0_3 = arith.constant 0 : index
    %c0_4 = arith.constant 0 : index
    %3 = vector.load %arg3[%c0_3, %c0_4] : memref<1x64xf32, #tpu.memory_space<vmem>>, vector<1x64xf32>
    %4 = vector.broadcast %3 : vector<1x64xf32> to vector<16x64xf32>
    %5 = arith.addf %2, %4 : vector<16x64xf32>
    %cst_5 = arith.constant 0.000000e+00 : f32
    %6 = vector.broadcast %cst_5 : f32 to vector<16x64xf32>
    %7 = arith.maximumf %5, %6 : vector<16x64xf32>
    %c0_6 = arith.constant 0 : index
    %c0_7 = arith.constant 0 : index
    %8 = vector.load %arg4[%c0_6, %c0_7] : memref<64x32xf32, #tpu.memory_space<vmem>>, vector<64x32xf32>
    %cst_8 = arith.constant dense<0.000000e+00> : vector<16x32xf32>
    %9 = tpu.matmul %7, %8, %cst_8 {dimension_numbers = #tpu.dot_dimension_numbers<[1], [0], [0], [1], [0, 0, 1, 1], [], []>} : vector<16x64xf32>, vector<64x32xf32>, vector<16x32xf32> -> vector<16x32xf32>
    %c0_9 = arith.constant 0 : index
    %c0_10 = arith.constant 0 : index
    %10 = vector.load %arg5[%c0_9, %c0_10] : memref<1x32xf32, #tpu.memory_space<vmem>>, vector<1x32xf32>
    %11 = vector.broadcast %10 : vector<1x32xf32> to vector<16x32xf32>
    %12 = arith.addf %9, %11 : vector<16x32xf32>
    %13 = arith.addf %12, %0 : vector<16x32xf32>
    %cst_11 = arith.constant dense<0.000000e+00> : vector<16xf32>
    %14 = vector.multi_reduction <add>, %13, %cst_11 [1] : vector<16x32xf32> to vector<16xf32>
    %15 = vector.shape_cast %14 : vector<16xf32> to vector<16x1xf32>
    %cst_12 = arith.constant 3.200000e+01 : f32
    %16 = vector.broadcast %cst_12 : f32 to vector<16x1xf32>
    %17 = arith.divf %15, %16 : vector<16x1xf32>
    %18 = vector.broadcast %17 : vector<16x1xf32> to vector<16x32xf32>
    %19 = arith.subf %13, %18 : vector<16x32xf32>
    %20 = arith.mulf %19, %19 : vector<16x32xf32>
    %cst_13 = arith.constant dense<0.000000e+00> : vector<16xf32>
    %21 = vector.multi_reduction <add>, %20, %cst_13 [1] : vector<16x32xf32> to vector<16xf32>
    %22 = vector.shape_cast %21 : vector<16xf32> to vector<16x1xf32>
    %cst_14 = arith.constant 0.0322580636 : f32
    %23 = vector.broadcast %cst_14 : f32 to vector<16x1xf32>
    %24 = arith.mulf %22, %23 : vector<16x1xf32>
    %25 = math.sqrt %24 : vector<16x1xf32>
    %cst_15 = arith.constant 1.000000e-03 : f32
    %26 = vector.broadcast %cst_15 : f32 to vector<16x1xf32>
    %27 = arith.addf %25, %26 : vector<16x1xf32>
    %28 = tpu.reciprocal %27 {approx = true} : vector<16x1xf32> -> vector<16x1xf32>
    %29 = arith.mulf %27, %28 : vector<16x1xf32>
    %cst_16 = arith.constant 2.000000e+00 : f32
    %30 = vector.broadcast %cst_16 : f32 to vector<16x1xf32>
    %31 = arith.subf %30, %29 : vector<16x1xf32>
    %32 = arith.mulf %28, %31 : vector<16x1xf32>
    %c0_17 = arith.constant 0 : index
    %c0_18 = arith.constant 0 : index
    %33 = vector.load %arg6[%c0_17, %c0_18] : memref<1x32xf32, #tpu.memory_space<vmem>>, vector<1x32xf32>
    %34 = vector.broadcast %32 : vector<16x1xf32> to vector<16x32xf32>
    %35 = vector.broadcast %33 : vector<1x32xf32> to vector<16x32xf32>
    %36 = arith.mulf %34, %35 : vector<16x32xf32>
    %37 = arith.mulf %19, %36 : vector<16x32xf32>
    %c0_19 = arith.constant 0 : index
    %c0_20 = arith.constant 0 : index
    %38 = vector.load %arg7[%c0_19, %c0_20] : memref<1x32xf32, #tpu.memory_space<vmem>>, vector<1x32xf32>
    %39 = vector.broadcast %38 : vector<1x32xf32> to vector<16x32xf32>
    %40 = arith.addf %37, %39 : vector<16x32xf32>
    %c0_21 = arith.constant 0 : index
    %c0_22 = arith.constant 0 : index
    %41 = vector.load %arg8[%c0_21, %c0_22] : memref<16x32xf32, #tpu.memory_space<vmem>>, vector<16x32xf32>
    tpu.vector_store %arg8[%c0_21, %c0_22], %40 {strides = array<i32>} : memref<16x32xf32, #tpu.memory_space<vmem>>, vector<16x32xf32>,
    return
  }
  func.func @transform_0(%arg0: i32) -> (i32, i32) {
    %c0_i32 = arith.constant 0 : i32
    %c0_i32_0 = arith.constant 0 : i32
    return %arg0, %c0_i32 : i32, i32
  }
  func.func @transform_1(%arg0: i32) -> (i32, i32) {
    %c0_i32 = arith.constant 0 : i32
    %c0_i32_0 = arith.constant 0 : i32
    %c0_i32_1 = arith.constant 0 : i32
    return %c0_i32, %c0_i32_0 : i32, i32
  }
  func.func @transform_2(%arg0: i32) -> (i32, i32) {
    %c0_i32 = arith.constant 0 : i32
    %c0_i32_0 = arith.constant 0 : i32
    %c0_i32_1 = arith.constant 0 : i32
    return %c0_i32, %c0_i32_0 : i32, i32
  }
  func.func @transform_3(%arg0: i32) -> (i32, i32) {
    %c0_i32 = arith.constant 0 : i32
    %c0_i32_0 = arith.constant 0 : i32
    %c0_i32_1 = arith.constant 0 : i32
    return %c0_i32, %c0_i32_0 : i32, i32
  }
  func.func @transform_4(%arg0: i32) -> (i32, i32) {
    %c0_i32 = arith.constant 0 : i32
    %c0_i32_0 = arith.constant 0 : i32
    %c0_i32_1 = arith.constant 0 : i32
    return %c0_i32, %c0_i32_0 : i32, i32
  }
  func.func @transform_5(%arg0: i32) -> (i32, i32) {
    %c0_i32 = arith.constant 0 : i32
    %c0_i32_0 = arith.constant 0 : i32
    %c0_i32_1 = arith.constant 0 : i32
    return %c0_i32, %c0_i32_0 : i32, i32
  }
  func.func @transform_6(%arg0: i32) -> (i32, i32) {
    %c0_i32 = arith.constant 0 : i32
    %c0_i32_0 = arith.constant 0 : i32
    %c0_i32_1 = arith.constant 0 : i32
    return %c0_i32, %c0_i32_0 : i32, i32
  }
  func.func @transform_7(%arg0: i32) -> (i32, i32) {
    %c0_i32 = arith.constant 0 : i32
    %c0_i32_0 = arith.constant 0 : i32
    return %arg0, %c0_i32 : i32, i32
  }
}

</mosaic_0001>

<llo_original>
// kernel: tpu_custom_call.1
$region0: #{tpu_custom_call.1}
  #allocation0 [shape = 'u32[]', space=smem, size = 0x4, offset = 0x4, fixed_abs, tag = 'smem constant byte address 0x4 - core index']
  #allocation1 [shape = 'u32[144,128]{1,0:T(1,128)}', space=vmem, size = 0x12000, scoped, tag = 'internal scratch']
  %s0 = inlined_call_operand.vmem [shape: f32[16,32], index: 0, kind: input, shape index: {}]
  %s1 = inlined_call_operand.vmem [shape: f32[32,64], index: 1, kind: input, shape index: {}]
  %s2 = inlined_call_operand.vmem [shape: f32[1,64], index: 2, kind: input, shape index: {}]
  %s3 = inlined_call_operand.vmem [shape: f32[64,32], index: 3, kind: input, shape index: {}]
  %s4 = inlined_call_operand.vmem [shape: f32[1,32], index: 4, kind: input, shape index: {}]
  %s5 = inlined_call_operand.vmem [shape: f32[1,32], index: 5, kind: input, shape index: {}]
  %s6 = inlined_call_operand.vmem [shape: f32[1,32], index: 6, kind: input, shape index: {}]
  %s7 = inlined_call_operand.hbm [shape: f32[16,32], index: 7, kind: output, shape index: {}]
  %s8 = sld [smem:[#allocation0]]
  $region38: #{tpu_custom_call.1} parent=0
    _
  %s10 = ssub.s32 1, %s8
  %s11 = scalar_select 0, %s10, %s8
  $region1: #{tpu_custom_call.1} parent=0
    #allocation2 [shape = 'u8[8192]{0}', space=vmem, size = 0x2000, scoped, tag = 'output window, operand 0, single buffered']
    #allocation3 [shape = 's32[1]{0}', space=sflag, size = 0x4, scoped, tag = 'scoped memory for tpu_custom_call.1']
    %12 = vsyncpa [#allocation3], 0
    // Predicated region
    $region2: #{tpu_custom_call.1} parent=1 // pred_check
      _
    $region3: #{tpu_custom_call.1} parent=1 // pred_check_branch
      %14 = sbr.rel (0) target = $region5
    $region4: #{tpu_custom_call.1} parent=1 // pred_region
      _
    $region5: #{tpu_custom_call.1} parent=1 // pred_fallthru
      _
    // Predicated region
    $region6: #{tpu_custom_call.1} parent=1 // pred_check
      _
    $region7: #{tpu_custom_call.1} parent=1 // pred_check_branch
      %16 = sbr.rel (0) target = $region9
    $region8: #{tpu_custom_call.1} parent=1 // pred_region
      _
    $region9: #{tpu_custom_call.1} parent=1 // pred_fallthru
      _
    // Predicated region
    $region10: #{tpu_custom_call.1} parent=1 // pred_check
      _
    $region11: #{tpu_custom_call.1} parent=1 // pred_check_branch
      %18 = sbr.rel (0) target = $region13
    $region12: #{tpu_custom_call.1} parent=1 // pred_region
      _
    $region13: #{tpu_custom_call.1} parent=1 // pred_fallthru
      _
    // Predicated region
    $region14: #{tpu_custom_call.1} parent=1 // pred_check
      _
    $region15: #{tpu_custom_call.1} parent=1 // pred_check_branch
      %20 = sbr.rel (0) target = $region17
    $region16: #{tpu_custom_call.1} parent=1 // pred_region
      _
    $region17: #{tpu_custom_call.1} parent=1 // pred_fallthru
      _
    // Predicated region
    $region18: #{tpu_custom_call.1} parent=1 // pred_check
      _
    $region19: #{tpu_custom_call.1} parent=1 // pred_check_branch
      %22 = sbr.rel (0) target = $region21
    $region20: #{tpu_custom_call.1} parent=1 // pred_region
      _
    $region21: #{tpu_custom_call.1} parent=1 // pred_fallthru
      _
    // Predicated region
    $region22: #{tpu_custom_call.1} parent=1 // pred_check
      _
    $region23: #{tpu_custom_call.1} parent=1 // pred_check_branch
      %24 = sbr.rel (0) target = $region25
    $region24: #{tpu_custom_call.1} parent=1 // pred_region
      _
    $region25: #{tpu_custom_call.1} parent=1 // pred_fallthru
      _
    // Predicated region
    $region26: #{tpu_custom_call.1} parent=1 // pred_check
      _
    $region27: #{tpu_custom_call.1} parent=1 // pred_check_branch
      %26 = sbr.rel (0) target = $region29
    $region28: #{tpu_custom_call.1} parent=1 // pred_region
      _
    $region29: #{tpu_custom_call.1} parent=1 // pred_fallthru
      _
    %v27 = vld [vmem:[%s0] sm:$0xff]
    %v28 = vld [vmem:[%s0 + $0x8] sm:$0xff]
    %v29 = vld [vmem:[%s1] sm:$0xff]
    %v30 = vld [vmem:[%s1 + $0x8] sm:$0xff]
    %v31 = vld [vmem:[%s1 + $0x10] sm:$0xff]
    %v32 = vld [vmem:[%s1 + $0x18] sm:$0xff]
    %v33 = vld [vmem:[%s2] sm:$0x1]
    %v35 = vlaneseq
    %v36 = vshrl.u32 %v35, 7
    %v37 = vsub.s32 0, %v36
    %v38 = vrot.slane %v33, %v37
    %vm40 = vcmask 261120
    %v42 = vsel %vm40, %v27, 0
    %v45 = vsel %vm40, %v28, 0
    %47 = vmatprep.subr.mxu0 0.0
    %48 = vmatpush1.msra.mxu0 0.0
    %49 = vmatprep.subr.mxu0 0.0
    %50 = vmatpush1.msra.mxu0 0.0
    %51 = vmatprep.subr.mxu0 0.0
    %52 = vmatpush1.msra.mxu0 0.0
    %53 = vmatprep.subr.mxu0 0.0
    %54 = vmatpush1.msra.mxu0 0.0
    %55 = vmatprep.subr.mxu0 0.0
    %56 = vmatpush1.msra.mxu0 0.0
    %57 = vmatprep.subr.mxu0 0.0
    %58 = vmatpush1.msra.mxu0 0.0
    %59 = vmatprep.subr.mxu0 0.0
    %60 = vmatpush1.msra.mxu0 0.0
    %61 = vmatprep.subr.mxu0 0.0
    %62 = vmatpush1.msra.mxu0 0.0
    %63 = vmatprep.subr.mxu0 0.0
    %64 = vmatpush1.msra.mxu0 0.0
    %65 = vmatprep.subr.mxu0 0.0
    %66 = vmatpush1.msra.mxu0 0.0
    %67 = vmatprep.subr.mxu0 0.0
    %68 = vmatpush1.msra.mxu0 0.0
    %69 = vmatprep.subr.mxu0 0.0
    %70 = vmatpush1.msra.mxu0 0.0
    %71 = vmatprep.subr.mxu0 0.0
    %72 = vmatpush1.msra.mxu0 %v32
    %73 = vmatprep.subr.mxu0 0.0
    %74 = vmatpush1.msra.mxu0 %v31
    %75 = vmatprep.subr.mxu0 0.0
    %76 = vmatpush1.msra.mxu0 %v30
    %77 = vmatprep.subr.mxu0 0.0
    %78 = vmatpush1.msra.mxu0 %v29
    %79 = vmatprep.subr.mxu0 0.0
    %80 = vmatpush2.msra.mxu0 0.0
    %81 = vmatprep.subr.mxu0 0.0
    %82 = vmatpush2.msra.mxu0 0.0
    %83 = vmatprep.subr.mxu0 0.0
    %84 = vmatpush2.msra.mxu0 0.0
    %85 = vmatprep.subr.mxu0 0.0
    %86 = vmatpush2.msra.mxu0 0.0
    %87 = vmatprep.subr.mxu0 0.0
    %88 = vmatpush2.msra.mxu0 0.0
    %89 = vmatprep.subr.mxu0 0.0
    %90 = vmatpush2.msra.mxu0 0.0
    %91 = vmatprep.subr.mxu0 0.0
    %92 = vmatpush2.msra.mxu0 0.0
    %93 = vmatprep.subr.mxu0 0.0
    %94 = vmatpush2.msra.mxu0 0.0
    %95 = vmatprep.subr.mxu0 0.0
    %96 = vmatpush2.msra.mxu0 0.0
    %97 = vmatprep.subr.mxu0 0.0
    %98 = vmatpush2.msra.mxu0 0.0
    %99 = vmatprep.subr.mxu0 0.0
    %100 = vmatpush2.msra.mxu0 0.0
    %101 = vmatprep.subr.mxu0 0.0
    %102 = vmatpush2.msra.mxu0 0.0
    %103 = vmatprep.subr.mxu0 0.0
    %104 = vmatpush2.msra.mxu0 0.0
    %105 = vmatprep.subr.mxu0 0.0
    %106 = vmatpush2.msra.mxu0 0.0
    %107 = vmatprep.subr.mxu0 0.0
    %108 = vmatpush2.msra.mxu0 0.0
    %109 = vmatprep.subr.mxu0 0.0
    %110 = vmatpush2.msra.mxu0 0.0
    %111 = vmatprep.mubr.f32.mxu0 0.0
    %112 = vmatmul.mubr.f32.gmra.mxu0 %v42
    %v113 = vpop.f32.mrf.mxu0
    %v114 = vadd.f32 %v38, %v113
    %v115 = vpop.f32.mrf.mxu0
    %116 = vmatprep.mubr.f32.mxu0 0.0
    %117 = vmatmul.mubr.f32.gmra.mxu0 %v45
    %v118 = vpop.f32.mrf.mxu0
    %v119 = vadd.f32 %v38, %v118
    %v120 = vpop.f32.mrf.mxu0
    %121 = vdwg.mxu0
    %v122 = vmax.f32 %v114, 0.0
    %v123 = vmax.f32 %v119, 0.0
    %v124 = vld [vmem:[%s3] sm:$0xff]
    %v125 = vld [vmem:[%s3 + $0x8] sm:$0xff]
    %v126 = vld [vmem:[%s3 + $0x10] sm:$0xff]
    %v127 = vld [vmem:[%s3 + $0x18] sm:$0xff]
    %v128 = vld [vmem:[%s3 + $0x20] sm:$0xff]
    %v129 = vld [vmem:[%s3 + $0x28] sm:$0xff]
    %v130 = vld [vmem:[%s3 + $0x30] sm:$0xff]
    %v131 = vld [vmem:[%s3 + $0x38] sm:$0xff]
    %v132 = vld [vmem:[%s4] sm:$0x1]
    %v134 = vlaneseq
    %v135 = vshrl.u32 %v134, 7
    %v136 = vsub.s32 0, %v135
    %v137 = vrot.slane %v132, %v136
    %vm139 = vcmask 523264
    %v141 = vsel %vm139, %v122, 0
    %v144 = vsel %vm139, %v123, 0
    %146 = vmatprep.subr.mxu0 0.0
    %147 = vmatpush1.msra.mxu0 0.0
    %148 = vmatprep.subr.mxu0 0.0
    %149 = vmatpush1.msra.mxu0 0.0
    %150 = vmatprep.subr.mxu0 0.0
    %151 = vmatpush1.msra.mxu0 0.0
    %152 = vmatprep.subr.mxu0 0.0
    %153 = vmatpush1.msra.mxu0 0.0
    %154 = vmatprep.subr.mxu0 0.0
    %155 = vmatpush1.msra.mxu0 0.0
    %156 = vmatprep.subr.mxu0 0.0
    %157 = vmatpush1.msra.mxu0 0.0
    %158 = vmatprep.subr.mxu0 0.0
    %159 = vmatpush1.msra.mxu0 0.0
    %160 = vmatprep.subr.mxu0 0.0
    %161 = vmatpush1.msra.mxu0 0.0
    %162 = vmatprep.subr.mxu0 0.0
    %163 = vmatpush1.msra.mxu0 %v131
    %164 = vmatprep.subr.mxu0 0.0
    %165 = vmatpush1.msra.mxu0 %v130
    %166 = vmatprep.subr.mxu0 0.0
    %167 = vmatpush1.msra.mxu0 %v129
    %168 = vmatprep.subr.mxu0 0.0
    %169 = vmatpush1.msra.mxu0 %v128
    %170 = vmatprep.subr.mxu0 0.0
    %171 = vmatpush1.msra.mxu0 %v127
    %172 = vmatprep.subr.mxu0 0.0
    %173 = vmatpush1.msra.mxu0 %v126
    %174 = vmatprep.subr.mxu0 0.0
    %175 = vmatpush1.msra.mxu0 %v125
    %176 = vmatprep.subr.mxu0 0.0
    %177 = vmatpush1.msra.mxu0 %v124
    %178 = vmatprep.subr.mxu0 0.0
    %179 = vmatpush2.msra.mxu0 0.0
    %180 = vmatprep.subr.mxu0 0.0
    %181 = vmatpush2.msra.mxu0 0.0
    %182 = vmatprep.subr.mxu0 0.0
    %183 = vmatpush2.msra.mxu0 0.0
    %184 = vmatprep.subr.mxu0 0.0
    %185 = vmatpush2.msra.mxu0 0.0
    %186 = vmatprep.subr.mxu0 0.0
    %187 = vmatpush2.msra.mxu0 0.0
    %188 = vmatprep.subr.mxu0 0.0
    %189 = vmatpush2.msra.mxu0 0.0
    %190 = vmatprep.subr.mxu0 0.0
    %191 = vmatpush2.msra.mxu0 0.0
    %192 = vmatprep.subr.mxu0 0.0
    %193 = vmatpush2.msra.mxu0 0.0
    %194 = vmatprep.subr.mxu0 0.0
    %195 = vmatpush2.msra.mxu0 0.0
    %196 = vmatprep.subr.mxu0 0.0
    %197 = vmatpush2.msra.mxu0 0.0
    %198 = vmatprep.subr.mxu0 0.0
    %199 = vmatpush2.msra.mxu0 0.0
    %200 = vmatprep.subr.mxu0 0.0
    %201 = vmatpush2.msra.mxu0 0.0
    %202 = vmatprep.subr.mxu0 0.0
    %203 = vmatpush2.msra.mxu0 0.0
    %204 = vmatprep.subr.mxu0 0.0
    %205 = vmatpush2.msra.mxu0 0.0
    %206 = vmatprep.subr.mxu0 0.0
    %207 = vmatpush2.msra.mxu0 0.0
    %208 = vmatprep.subr.mxu0 0.0
    %209 = vmatpush2.msra.mxu0 0.0
    %210 = vmatprep.mubr.f32.mxu0 0.0
    %211 = vmatmul.mubr.f32.gmra.mxu0 %v141
    %v212 = vpop.f32.mrf.mxu0
    %v213 = vadd.f32 %v137, %v212
    %v214 = vpop.f32.mrf.mxu0
    %215 = vmatprep.mubr.f32.mxu0 0.0
    %216 = vmatmul.mubr.f32.gmra.mxu0 %v144
    %v217 = vpop.f32.mrf.mxu0
    %v218 = vadd.f32 %v137, %v217
    %v219 = vpop.f32.mrf.mxu0
    %220 = vdwg.mxu0
    %v221 = vadd.f32 %v213, %v27
    %v222 = vadd.f32 %v218, %v28
    %v223 = vsel %vm40, %v221, 0.0
    %224 = vadd.xlane.f32.xlu0 %v223
    %v225 = vpop.xlane.xlu0 %224
    %v226 = vsel %vm40, %v222, 0.0
    %227 = vadd.xlane.f32.xlu0 %v226
    %v228 = vpop.xlane.xlu0 %227
    %v229 = vrcp.pop 32.0
    %v230 = vmul.f32 %v225, %v229
    %v231 = vmul.f32 %v228, %v229
    %v232 = vsub.f32 %v221, %v230
    %v233 = vsub.f32 %v222, %v231
    %v234 = vmul.f32 %v232, %v232
    %v235 = vmul.f32 %v233, %v233
    %v236 = vsel %vm40, %v234, 0.0
    %237 = vadd.xlane.f32.xlu0 %v236
    %v238 = vpop.xlane.xlu0 %237
    %v239 = vsel %vm40, %v235, 0.0
    %240 = vadd.xlane.f32.xlu0 %v239
    %v241 = vpop.xlane.xlu0 %240
    %v242 = vmul.f32 %v238, 0.032258064
    %v243 = vmul.f32 %v241, 0.032258064
    %v244 = vrsqrt.pop %v242
    %v245 = vmul.f32 %v242, %v244
    %vm246 = vcmp.eq.f32.partialorder %v242, inf
    %v247 = vsel %vm246, %v242, %v245
    %vm248 = vcmp.eq.f32.partialorder %v242, 0.0
    %v249 = vand.u32 %v242, 2147483648
    %v250 = vsel %vm248, %v249, %v247
    %v251 = vrsqrt.pop %v243
    %v252 = vmul.f32 %v243, %v251
    %vm253 = vcmp.eq.f32.partialorder %v243, inf
    %v254 = vsel %vm253, %v243, %v252
    %vm255 = vcmp.eq.f32.partialorder %v243, 0.0
    %v256 = vand.u32 %v243, 2147483648
    %v257 = vsel %vm255, %v256, %v254
    %v258 = vadd.f32 %v250, 0.001
    %v259 = vadd.f32 %v257, 0.001
    %v260 = vrcp.pop %v258
    %v261 = vrcp.pop %v259
    %v262 = vmul.f32 %v258, %v260
    %v263 = vmul.f32 %v259, %v261
    %v264 = vsub.f32 2.0, %v262
    %v265 = vsub.f32 2.0, %v263
    %v266 = vmul.f32 %v260, %v264
    %v267 = vmul.f32 %v261, %v265
    %v268 = vld [vmem:[%s5] sm:$0x1]
    %v270 = vlaneseq
    %v271 = vshrl.u32 %v270, 7
    %v272 = vsub.s32 0, %v271
    %v273 = vrot.slane %v268, %v272
    %v275 = vmul.f32 %v266, %v273
    %v276 = vmul.f32 %v267, %v273
    %v277 = vmul.f32 %v232, %v275
    %v278 = vmul.f32 %v233, %v276
    %v279 = vld [vmem:[%s6] sm:$0x1]
    %v281 = vlaneseq
    %v282 = vshrl.u32 %v281, 7
    %v283 = vsub.s32 0, %v282
    %v284 = vrot.slane %v279, %v283
    %v286 = vadd.f32 %v277, %v284
    %v287 = vadd.f32 %v278, %v284
    %288 = vst.msk [vmem:[#allocation2] sm:$0xff] %vm40, %v286
    %289 = vst.msk [vmem:[#allocation2 + $0x8] sm:$0xff] %vm40, %v287
    // Predicated region
    $region30: #{tpu_custom_call.1} parent=1 // pred_check
      _
    $region31: #{tpu_custom_call.1} parent=1 // pred_check_branch
      %291 = sbr.rel (0) target = $region33
    $region32: #{tpu_custom_call.1} parent=1 // pred_region
      %s293 = ssub.s32 256, 256
      %294 = vsyncadd [#allocation3], %s293
      %s295 = sshll.u32 [#allocation2], 4
      %s296 = int_to_ptr.vmem [resolvable:$true] %s295
      %301 = dma.vmem_to_hbm [thread:$0]  %s296, 256, %s7, [#allocation3], 128, 128, 8
    $region33: #{tpu_custom_call.1} parent=1 // pred_fallthru
      _
    // Predicated region
    $region34: #{tpu_custom_call.1} parent=1 // pred_check
      _
    $region35: #{tpu_custom_call.1} parent=1 // pred_check_branch
      %303 = sbr.rel (0) target = $region37
    $region36: #{tpu_custom_call.1} parent=1 // pred_region
      %304 = dma.done [#allocation3], 256
    $region37: #{tpu_custom_call.1} parent=1 // pred_fallthru
      _
    %305 = vsyncpa [#allocation3], 1

</llo_original>
